<compile_context>
chip_gen: v7x
topology: tpu7x:2x2x1
jax: 0.10.0
libtpu: 0.0.40
codegen_flags: <defaults>
</compile_context>

<pallas_src>
import math
import functools

import jax
import jax.numpy as jnp
from jax.experimental import pallas as pl
from jax.experimental.pallas import tpu as pltpu


# -----------------------------------------------------------------------------
# Parameter setup (equivalent of __init__ / register_buffer('pe', ...))
# -----------------------------------------------------------------------------
def make_positional_encoding(d_model: int, max_len: int) -> jnp.ndarray:
    """Builds the (max_len, d_model) sin/cos table (pe[:, 0, :] in PyTorch)."""
    position = jnp.arange(max_len, dtype=jnp.float32)[:, None]              # (L, 1)
    div_term = jnp.exp(
        jnp.arange(0, d_model, 2, dtype=jnp.float32) * (-math.log(10000.0) / d_model)
    )                                                                        # (D/2,)
    angles = position * div_term                                             # (L, D/2)
    pe = jnp.zeros((max_len, d_model), dtype=jnp.float32)
    pe = pe.at[:, 0::2].set(jnp.sin(angles))
    pe = pe.at[:, 1::2].set(jnp.cos(angles))
    return pe


# -----------------------------------------------------------------------------
# Kernels (operate on flattened [batch_tile, feature_tile] blocks)
# -----------------------------------------------------------------------------
def pe_add_kernel(x_ref, pe_ref, o_ref):
    """Eval mode: out = x + pe (dropout is identity)."""
    # x_ref: (tB, tF); pe_ref: (1, tF) -> sublane-broadcast over batch rows.
    y = x_ref[...].astype(jnp.float32) + pe_ref[...]
    o_ref[...] = y.astype(o_ref.dtype)


def pe_add_dropout_kernel(x_ref, pe_ref, bits_ref, o_ref, *, threshold: int, scale: float):
    """Training mode: out = dropout(x + pe) with keep-prob scaling 1/(1-p)."""
    y = x_ref[...].astype(jnp.float32) + pe_ref[...]
    # Single integer threshold: P(bits < threshold) == p  (drop), keep otherwise.
    keep = bits_ref[...] >= jnp.uint32(threshold)
    o_ref[...] = jnp.where(keep, y * jnp.float32(scale), jnp.float32(0.0)).astype(o_ref.dtype)


# -----------------------------------------------------------------------------
# Wrapper (forward pass)
# -----------------------------------------------------------------------------
# Lanes per feature block (multiple of 128). With an 8-row batch tile in fp32
# this is 1 MiB per block -> <= ~6.5 MiB of double-buffered VMEM in training.
_TARGET_TF = 32 * 1024


def positional_encoding_forward(
    x: jnp.ndarray,        # [batch, seq, d_model]
    pe: jnp.ndarray,       # [max_len, d_model] float32 table
    *,
    dropout_p: float = 0.1,
    training: bool = False,
    rng_key=None,
) -> jnp.ndarray:
    B, S, D = x.shape
    assert S <= pe.shape[0], "sequence longer than max_len"
    assert D == pe.shape[1]

    F = S * D
    x_flat = x.reshape(B, F)                                   # row-major collapse, free
    pe_flat = pe[:S].reshape(1, F).astype(jnp.float32)         # (1, F), add done in f32

    # ---- tile sizes ---------------------------------------------------------
    # Last block dim: multiple of 128, or the full extent if F is small.
    tF = F if F <= _TARGET_TF else _TARGET_TF
    # Second-to-last block dim: multiple of 8, or the full extent if B is small.
    tB = B if B <= 8 else 8
    nF = pl.cdiv(F, tF)
    nB = pl.cdiv(B, tB)

    # Grid: feature tiles outer, batch tiles inner -> pe block index constant
    # across consecutive steps (stays VMEM-resident, DMA'd only nF times).
    grid = (nF, nB)
    x_spec = pl.BlockSpec((tB, tF), lambda f, b: (b, f))
    o_spec = pl.BlockSpec((tB, tF), lambda f, b: (b, f))
    pe_spec = pl.BlockSpec((1, tF), lambda f, b: (0, f))
    out_shape = jax.ShapeDtypeStruct((B, F), x.dtype)

    cparams = pltpu.CompilerParams(
        # Fully independent tiles -> shard across both v7x TensorCores.
        dimension_semantics=("parallel", "parallel"),
        # Blocks are sized well under every generation's budget; 32 MiB is just
        # explicit headroom and is <= physical VMEM on v5e/v6e/v7x.
        vmem_limit_bytes=32 * 1024 * 1024,
    )

    if training and dropout_p > 0.0:
        assert dropout_p < 1.0, "dropout_p == 1.0 would zero everything / divide by zero"
        assert rng_key is not None, "training-mode dropout needs an rng_key"
        bits = jax.random.bits(rng_key, (B, F), dtype=jnp.uint32)
        threshold = min(int(round(dropout_p * 2.0**32)), 2**32 - 1)
        scale = 1.0 / (1.0 - dropout_p)
        kernel = functools.partial(pe_add_dropout_kernel, threshold=threshold, scale=scale)
        bits_spec = pl.BlockSpec((tB, tF), lambda f, b: (b, f))
        out_flat = pl.pallas_call(
            kernel,
            out_shape=out_shape,
            grid=grid,
            in_specs=[x_spec, pe_spec, bits_spec],
            out_specs=o_spec,
            compiler_params=cparams,
        )(x_flat, pe_flat, bits)
    else:
        out_flat = pl.pallas_call(
            pe_add_kernel,
            out_shape=out_shape,
            grid=grid,
            in_specs=[x_spec, pe_spec],
            out_specs=o_spec,
            compiler_params=cparams,
        )(x_flat, pe_flat)

    return out_flat.reshape(B, S, D)


# -----------------------------------------------------------------------------
# Demo / correctness check
# -----------------------------------------------------------------------------
if __name__ == "__main__":
    batch, seq, d_model, max_len = 2, 8, 32, 16
    dropout_p = 0.1

    key = jax.random.PRNGKey(0)
    k_x, k_drop = jax.random.split(key)
    x = jax.random.normal(k_x, (batch, seq, d_model), dtype=jnp.float32)
    pe = make_positional_encoding(d_model, max_len)

    # Eval-mode forward (dropout is identity -> deterministic, matches the
    # PyTorch module in .eval()).
    out = positional_encoding_forward(x, pe, dropout_p=dropout_p, training=False)
    out = jax.block_until_ready(out)

    ref = x + pe[:seq][None, :, :]
    assert out.shape == x.shape
    assert jnp.allclose(out, ref, atol=1e-6), "eval-mode mismatch vs reference"

    # Training-mode forward (stochastic dropout; PyTorch RNG cannot be
    # bit-matched, so check the dropout invariant instead: every element is
    # either 0 or (x+pe)/(1-p)).
    out_train = positional_encoding_forward(
        x, pe, dropout_p=dropout_p, training=True, rng_key=k_drop
    )
    out_train = jax.block_until_ready(out_train)
    assert out_train.shape == x.shape
    assert bool(jnp.all(jnp.isfinite(out_train)))
    scaled_ref = ref / (1.0 - dropout_p)
    ok = jnp.isclose(out_train, scaled_ref, atol=1e-5) | (out_train == 0.0)
    assert bool(jnp.all(ok)), "training-mode dropout invariant violated"

    print("KERNEL_OK")
</pallas_src>

<mosaic_0001>
module attributes {stable_mosaic.version = 11 : i64} {
  func.func @pe_add_kernel(%arg0: i32, %arg1: i32, %arg2: memref<2x256xf32, #tpu.memory_space<vmem>>, %arg3: memref<1x256xf32, #tpu.memory_space<vmem>>, %arg4: memref<2x256xf32, #tpu.memory_space<vmem>>) attributes {dimension_semantics = [#tpu.dimension_semantics<parallel>, #tpu.dimension_semantics<parallel>], iteration_bounds = array<i64: 1, 1>, scalar_prefetch = 0 : i64, scratch_operands = 0 : i64, tpu.core_type = #tpu.core_type<tc>, window_params = [{transform_indices = @transform_0, window_bounds = array<i64: 2, 256>}, {transform_indices = @transform_1, window_bounds = array<i64: 1, 256>}, {transform_indices = @transform_2, window_bounds = array<i64: 2, 256>}]} {
    %c0 = arith.constant 0 : index
    %c0_0 = arith.constant 0 : index
    %0 = vector.load %arg2[%c0, %c0_0] : memref<2x256xf32, #tpu.memory_space<vmem>>, vector<2x256xf32>
    %c0_1 = arith.constant 0 : index
    %c0_2 = arith.constant 0 : index
    %1 = vector.load %arg3[%c0_1, %c0_2] : memref<1x256xf32, #tpu.memory_space<vmem>>, vector<1x256xf32>
    %2 = vector.broadcast %1 : vector<1x256xf32> to vector<2x256xf32>
    %3 = arith.addf %0, %2 : vector<2x256xf32>
    %c0_3 = arith.constant 0 : index
    %c0_4 = arith.constant 0 : index
    %4 = vector.load %arg4[%c0_3, %c0_4] : memref<2x256xf32, #tpu.memory_space<vmem>>, vector<2x256xf32>
    tpu.vector_store %arg4[%c0_3, %c0_4], %3 {strides = array<i32>} : memref<2x256xf32, #tpu.memory_space<vmem>>, vector<2x256xf32>,
    return
  }
  func.func @transform_0(%arg0: i32, %arg1: i32) -> (i32, i32) {
    %c0_i32 = arith.constant 0 : i32
    return %arg1, %arg0 : i32, i32
  }
  func.func @transform_1(%arg0: i32, %arg1: i32) -> (i32, i32) {
    %c0_i32 = arith.constant 0 : i32
    %c0_i32_0 = arith.constant 0 : i32
    return %c0_i32, %arg0 : i32, i32
  }
  func.func @transform_2(%arg0: i32, %arg1: i32) -> (i32, i32) {
    %c0_i32 = arith.constant 0 : i32
    return %arg1, %arg0 : i32, i32
  }
}

</mosaic_0001>

<llo_original>
// kernel: tpu_custom_call.1
$region0: #{tpu_custom_call.1}
  #allocation0 [shape = 'u32[]', space=smem, size = 0x4, offset = 0x4, fixed_abs, tag = 'smem constant byte address 0x4 - core index']
  #allocation1 [shape = 'u32[144,128]{1,0:T(1,128)}', space=vmem, size = 0x12000, scoped, tag = 'internal scratch']
  %s0 = inlined_call_operand.hbm [shape: f32[2,256], index: 0, kind: input, shape index: {}]
  %s1 = inlined_call_operand.vmem [shape: f32[1,256], index: 1, kind: input, shape index: {}]
  %s2 = inlined_call_operand.hbm [shape: f32[2,256], index: 2, kind: output, shape index: {}]
  %s3 = sld [smem:[#allocation0]]
  $region22: #{tpu_custom_call.1} parent=0
    _
  %s5 = ssub.s32 1, %s3
  %s6 = scalar_select 0, %s5, %s3
  $region1: #{tpu_custom_call.1} parent=0
    #allocation2 [shape = 'u8[2048]{0}', space=vmem, size = 0x800, scoped, tag = 'input window, operand 0, single buffered']
    #allocation3 [shape = 's32[1]{0}', space=sflag, size = 0x4, scoped, tag = 'scoped memory for tpu_custom_call.1']
    #allocation4 [shape = 's32[1]{0}', space=sflag, size = 0x4, scoped, tag = 'scoped memory for tpu_custom_call.1']
    #allocation5 [shape = 'u8[2048]{0}', space=vmem, size = 0x800, scoped, tag = 'output window, operand 0, single buffered']
    %7 = vsyncpa [#allocation3], 0
    %8 = vsyncpa [#allocation4], 0
    // Predicated region
    $region2: #{tpu_custom_call.1} parent=1 // pred_check
      _
    $region3: #{tpu_custom_call.1} parent=1 // pred_check_branch
      %10 = sbr.rel (0) target = $region5
    $region4: #{tpu_custom_call.1} parent=1 // pred_region
      %s12 = ssub.s32 64, 64
      %13 = vsyncadd [#allocation3], %s12
      %s15 = sshll.u32 [#allocation2], 4
      %s16 = int_to_ptr.vmem [resolvable:$true] %s15
      %18 = dma.hbm_to_vmem [thread:$0]  %s0, 64, %s16, [#allocation3]
    $region5: #{tpu_custom_call.1} parent=1 // pred_fallthru
      _
    // Predicated region
    $region6: #{tpu_custom_call.1} parent=1 // pred_check
      _
    $region7: #{tpu_custom_call.1} parent=1 // pred_check_branch
      %20 = sbr.rel (0) target = $region9
    $region8: #{tpu_custom_call.1} parent=1 // pred_region
      _
    $region9: #{tpu_custom_call.1} parent=1 // pred_fallthru
      _
    // Predicated region
    $region10: #{tpu_custom_call.1} parent=1 // pred_check
      _
    $region11: #{tpu_custom_call.1} parent=1 // pred_check_branch
      %22 = sbr.rel (0) target = $region13
    $region12: #{tpu_custom_call.1} parent=1 // pred_region
      %23 = dma.done [#allocation3], 64
    $region13: #{tpu_custom_call.1} parent=1 // pred_fallthru
      _
    %v24 = vld [vmem:[#allocation2] sm:$0xf]
    %v25 = vld [vmem:[%s1] sm:$0x3]
    %v27 = vlaneseq
    %v28 = vshrl.u32 %v27, 7
    %v29 = vsub.s32 0, %v28
    %v30 = vrot.slane %v25, %v29
    %v31 = vlaneseq
    %v32 = vshrl.u32 %v31, 7
    %v33 = vsub.s32 1, %v32
    %v34 = vrot.slane %v25, %v33
    %v35 = vcombine.low %v30, %v34
    %v37 = vunpack.c.l.s4 1983009808
    %v38 = vunpack.c.0.s8 %v37
    %v39 = vlaneseq
    %v40 = vshrl.u32 %v39, 7
    %v41 = vsub.s32 %v38, %v40
    %v42 = vrot.slane %v35, %v41
    %v44 = vadd.f32 %v24, %v42
    %45 = vst [vmem:[#allocation5] sm:$0xf] %v44
    // Predicated region
    $region14: #{tpu_custom_call.1} parent=1 // pred_check
      _
    $region15: #{tpu_custom_call.1} parent=1 // pred_check_branch
      %47 = sbr.rel (0) target = $region17
    $region16: #{tpu_custom_call.1} parent=1 // pred_region
      %s49 = ssub.s32 64, 64
      %50 = vsyncadd [#allocation4], %s49
      %s52 = sshll.u32 [#allocation5], 4
      %s53 = int_to_ptr.vmem [resolvable:$true] %s52
      %55 = dma.vmem_to_hbm [thread:$0]  %s53, 64, %s2, [#allocation4]
    $region17: #{tpu_custom_call.1} parent=1 // pred_fallthru
      _
    // Predicated region
    $region18: #{tpu_custom_call.1} parent=1 // pred_check
      _
    $region19: #{tpu_custom_call.1} parent=1 // pred_check_branch
      %57 = sbr.rel (0) target = $region21
    $region20: #{tpu_custom_call.1} parent=1 // pred_region
      %58 = dma.done [#allocation4], 64
    $region21: #{tpu_custom_call.1} parent=1 // pred_fallthru
      _
    %59 = vsyncpa [#allocation3], 1
    %60 = vsyncpa [#allocation4], 1

</llo_original>
